<compile_context>
chip_gen: v7x
topology: tpu7x:2x2x1
jax: 0.10.0
libtpu: 0.0.40
codegen_flags: <defaults>
</compile_context>

<pallas_src>
import functools
import math

import jax
import jax.numpy as jnp
from jax.experimental import pallas as pl
from jax.experimental.pallas import tpu as pltpu


# 1-D Gaussian taps (kernel_size=5, sigma=3), exactly as StaticGaussianSmoothing
# builds them (un-normalized, peak == 1.0).
_GAUSS_1D = tuple(math.exp(-(((i - 2.0) / 3.0) ** 2) / 2.0) for i in range(5))
_LOG_LO = math.log(1e-4)          # log of the sigmoid clamp lower bound
_LOG_HI = math.log(1.0 - 1e-4)    # log of the sigmoid clamp upper bound


# ----------------------------------------------------------------------------
# Fused per-sample kernel: GT-heatmap smoothing + focal partial sums + masked
# L1 sums + ReID classifier & weighted CE sum.  One grid step == one sample.
# ----------------------------------------------------------------------------
def _fairmot_loss_kernel(mask_pad_ref, heat_ref, bo_p_ref, bo_g_ref, dmask_ref,
                         feat_ref, label_ref, wrow_ref, wcls_ref, bcls_ref,
                         out_ref, *, hm, wm):
    f32 = jnp.float32

    # ---- GT heatmap: separable 5x5 Gaussian smoothing of the detection mask.
    m = mask_pad_ref[0]                                   # (hm+4, wm+4)
    tmpw = m[:, 0:wm] * _GAUSS_1D[0]                      # W pass (lane shifts)
    for j in range(1, 5):
        tmpw = tmpw + m[:, j:j + wm] * _GAUSS_1D[j]       # (hm+4, wm)
    gt = tmpw[0:hm, :] * _GAUSS_1D[0]                     # H pass (sublane shifts)
    for i in range(1, 5):
        gt = gt + tmpw[i:i + hm, :] * _GAUSS_1D[i]        # (hm, wm)

    # ---- Focal loss, logit form with stable softplus (3 EUP ops / pixel).
    x = heat_ref[0]                                       # (hm, wm) raw logits
    sp = jnp.maximum(-x, 0.0) + jnp.log(1.0 + jnp.exp(-jnp.abs(x)))  # softplus(-x)
    log_p = jnp.clip(-sp, _LOG_LO, _LOG_HI)               # log(clip(sigmoid(x)))
    log_1mp = jnp.clip(-x - sp, _LOG_LO, _LOG_HI)         # log(1 - clip(sigmoid(x)))
    p = jnp.clip(jnp.exp(-sp), 1e-4, 1.0 - 1e-4)          # clipped sigmoid(x)
    pos = (gt == 1.0).astype(f32)
    neg = (gt < 1.0).astype(f32)
    omg = 1.0 - gt
    neg_w = (omg * omg) * (omg * omg)                     # (1 - gt)^4
    omp = 1.0 - p
    pos_sum = jnp.sum((omp * omp) * log_p * pos)
    neg_sum = jnp.sum(neg_w * (p * p) * log_1mp * neg)
    num_pos = jnp.sum(pos)

    # ---- Masked L1 sums on a lane-dense (4, H*W) slab: one elementwise pass,
    # one reduction per loss (channel axis kept on sublanes).
    d = jnp.abs(bo_p_ref[0] - bo_g_ref[0]) * dmask_ref[0]   # (4, HW)
    box_l1 = jnp.sum(d[0:2, :])
    off_l1 = jnp.sum(d[2:4, :])

    # ---- ReID: linear classifier + per-box weighted cross-entropy sum.
    # NOTE: the (MBP, E) x (E, C) matmul is tiny; a single MXU issue on an
    # otherwise idle MXU is effectively free at these sizes.
    logits = jnp.dot(feat_ref[0], wcls_ref[...],
                     preferred_element_type=f32) + bcls_ref[...]   # (MBP, C)
    mrow = jnp.max(logits, axis=-1, keepdims=True)
    lse = mrow + jnp.log(jnp.sum(jnp.exp(logits - mrow), axis=-1, keepdims=True))
    cls_iota = jax.lax.broadcasted_iota(jnp.int32, logits.shape, 1)
    onehot = (cls_iota == label_ref[0]).astype(f32)                # (MBP, C)
    picked = jnp.sum(logits * onehot, axis=-1, keepdims=True)
    reid_sum = jnp.sum((lse - picked) * wrow_ref[0])

    # ---- pack 6 per-sample partial sums into a lane-dense (1,1,128) row.
    lane = jax.lax.broadcasted_iota(jnp.int32, (1, 1, 128), 2)
    out = jnp.where(lane == 0, pos_sum, 0.0)
    out = jnp.where(lane == 1, neg_sum, out)
    out = jnp.where(lane == 2, num_pos, out)
    out = jnp.where(lane == 3, box_l1, out)
    out = jnp.where(lane == 4, off_l1, out)
    out = jnp.where(lane == 5, reid_sum, out)
    out_ref[...] = out.astype(out_ref.dtype)


def _run_loss_kernel(mask_pad, heat, bo_p, bo_g, dmask, feats, labels, wrow,
                     wcls, bcls):
    n, hmp, wmp = mask_pad.shape
    hm, wm = hmp - 4, wmp - 4
    hw = hm * wm
    mbp, emb = feats.shape[1], feats.shape[2]
    ncls = wcls.shape[1]

    flops = n * (9 * hmp * wm + 9 * hm * wm        # separable smoother
                 + 16 * hm * wm                    # focal elementwise
                 + 3 * 4 * hw                      # masked L1
                 + 2 * mbp * emb * ncls            # classifier matmul
                 + 8 * mbp * ncls)                 # softmax CE
    transcendentals = n * (3 * hm * wm + mbp * (ncls + 2))
    bytes_accessed = 4 * (mask_pad.size + heat.size + bo_p.size + bo_g.size
                          + dmask.size + feats.size + labels.size + wrow.size
                          + n * (wcls.size + bcls.size) + n * 128)

    out = pl.pallas_call(
        functools.partial(_fairmot_loss_kernel, hm=hm, wm=wm),
        out_shape=jax.ShapeDtypeStruct((n, 1, 128), jnp.float32),
        grid=(n,),
        in_specs=[
            pl.BlockSpec((1, hmp, wmp), lambda i: (i, 0, 0)),   # padded det mask
            pl.BlockSpec((1, hm, wm), lambda i: (i, 0, 0)),     # heatmap logits
            pl.BlockSpec((1, 4, hw), lambda i: (i, 0, 0)),      # pred box/off flat
            pl.BlockSpec((1, 4, hw), lambda i: (i, 0, 0)),      # gt   box/off flat
            pl.BlockSpec((1, 1, hw), lambda i: (i, 0, 0)),      # det mask flat
            pl.BlockSpec((1, mbp, emb), lambda i: (i, 0, 0)),   # reid features
            pl.BlockSpec((1, mbp, 1), lambda i: (i, 0, 0)),     # class labels
            pl.BlockSpec((1, mbp, 1), lambda i: (i, 0, 0)),     # CE weights
            pl.BlockSpec((emb, ncls), lambda i: (0, 0)),        # classifier W^T
            pl.BlockSpec((1, ncls), lambda i: (0, 0)),          # classifier bias
        ],
        out_specs=pl.BlockSpec((1, 1, 128), lambda i: (i, 0, 0)),
        compiler_params=pltpu.CompilerParams(
            dimension_semantics=("parallel",),           # megacore on v7x
            vmem_limit_bytes=32 * 1024 * 1024),          # explicit, portable
        cost_estimate=pl.CostEstimate(flops=int(flops),
                                      transcendentals=int(transcendentals),
                                      bytes_accessed=int(bytes_accessed)),
    )(mask_pad, heat, bo_p, bo_g, dmask, feats, labels, wrow, wcls, bcls)
    # per-sample partial sums -> global sums
    return jnp.sum(out[:, 0, :], axis=0)


# ----------------------------------------------------------------------------
# FairMOTLoss forward: vectorized target construction (plain-XLA glue) + kernel
# ----------------------------------------------------------------------------
def make_fairmot_loss(num_classes, image_size):
    img_h, img_w = image_size

    def loss_fn(pred, ground_truth, cls_w, cls_b):
        heat = pred['heatmap_head'].astype(jnp.float32)[:, 0]        # (N,H,W)
        box_p = pred['box_sizes_head'].astype(jnp.float32)           # (N,2,H,W)
        off_p = pred['center_offsets_head'].astype(jnp.float32)      # (N,2,H,W)
        reid = pred['reid_head'].astype(jnp.float32)                 # (N,E,H,W)
        n, hm, wm = heat.shape
        hw = hm * wm
        mb = ground_truth.shape[1]
        gt = ground_truth.astype(jnp.float32)                        # (N,MB,5)

        # --- vectorized per-box target construction (no Python loops) ---
        valid = jnp.sum(jnp.abs(gt), axis=-1) != 0.0                 # (N,MB)
        tid = gt[..., 0]
        xc, yc = gt[..., 1], gt[..., 2]
        w, h = gt[..., 3], gt[..., 4]
        cls = jnp.where(tid > num_classes,
                        jnp.float32(num_classes - 1), tid - 1.0)
        labels = jnp.where(valid, cls, 0.0).astype(jnp.int32)        # (N,MB)
        yc_o, xc_o = yc * hm, xc * wm
        r = jnp.clip(yc_o.astype(jnp.int32), 0, hm - 1)
        c = jnp.clip(xc_o.astype(jnp.int32), 0, wm - 1)
        oy = yc_o - jnp.floor(yc_o)
        ox = xc_o - jnp.floor(xc_o)

        b_idx = jnp.broadcast_to(jnp.arange(n)[:, None], (n, mb))
        p_flat = r * wm + c
        p_scatter = jnp.where(valid, p_flat, hw)   # invalid -> OOB -> dropped

        mask_flat = jnp.zeros((n, hw), jnp.float32).at[b_idx, p_scatter].set(
            1.0, mode='drop')                                        # (N,HW)
        vals = jnp.stack([h * img_h, w * img_w, oy, ox], axis=-1)    # (N,MB,4)
        bo_g = jnp.zeros((n, hw, 4), jnp.float32).at[b_idx, p_scatter].set(
            vals, mode='drop')
        bo_g = jnp.transpose(bo_g, (0, 2, 1))                        # (N,4,HW)
        bo_p = jnp.concatenate([box_p, off_p], axis=1).reshape(n, 4, hw)

        feats = jnp.transpose(reid, (0, 2, 3, 1))[b_idx, r, c]       # (N,MB,E)

        validf = valid.astype(jnp.float32)
        n_valid = jnp.sum(validf, axis=1)                            # (N,)
        # TODO(synk): a sample with zero valid boxes gives NaN in PyTorch
        # (empty CrossEntropyLoss); here it simply contributes 0.
        denom = jnp.where(n_valid > 0, n_valid, 1.0)
        wrow = validf / denom[:, None]                               # (N,MB)

        # pad the per-sample box dim to a multiple of 8 (sublane alignment);
        # padded rows carry weight 0 so they never contribute.
        mbp = max(8, ((mb + 7) // 8) * 8)
        if mbp != mb:
            padn = mbp - mb
            feats = jnp.pad(feats, ((0, 0), (0, padn), (0, 0)))
            labels = jnp.pad(labels, ((0, 0), (0, padn)))
            wrow = jnp.pad(wrow, ((0, 0), (0, padn)))

        mask_pad = jnp.pad(mask_flat.reshape(n, hm, wm),
                           ((0, 0), (2, 2), (2, 2)))

        sums = _run_loss_kernel(
            mask_pad, heat, bo_p, bo_g, mask_flat.reshape(n, 1, hw),
            feats, labels.reshape(n, mbp, 1),
            wrow.reshape(n, mbp, 1).astype(jnp.float32),
            cls_w.T.astype(jnp.float32),
            cls_b.reshape(1, -1).astype(jnp.float32))

        pos_sum, neg_sum, num_pos = sums[0], sums[1], sums[2]
        box_l1, off_l1, reid_sum = sums[3], sums[4], sums[5]

        heat_loss = jnp.where(num_pos >= 1.0,
                              -(pos_sum + neg_sum) / num_pos,
                              -neg_sum)
        det_loss = 1.0 * heat_loss + 0.1 * box_l1 + 1.0 * off_l1
        total = 1.0 * det_loss + 1.0 * reid_sum
        return {
            'total_loss': total,
            'heatmap_loss': heat_loss,
            'box_sizes_loss': box_l1,
            'center_offsets_loss': off_l1,
            'detection_loss': det_loss,
            'reid_loss': reid_sum,
        }

    return jax.jit(loss_fn)


# ----------------------------------------------------------------------------
# Main
# ----------------------------------------------------------------------------
if __name__ == "__main__":
    NUM_CLASSES = 10
    EMB_DIM = 128
    INPUT_SHAPE = (3, 64, 64)        # (C, H, W) of the original image
    MAP_H, MAP_W = 16, 16            # prediction heads at 1/4 resolution
    BATCH = 2
    MAX_BOXES = 4

    key = jax.random.PRNGKey(0)
    keys = jax.random.split(key, 9)

    pred = {
        'heatmap_head': jax.random.normal(
            keys[0], (BATCH, 1, MAP_H, MAP_W), jnp.float32),
        'box_sizes_head': jax.random.normal(
            keys[1], (BATCH, 2, MAP_H, MAP_W), jnp.float32),
        'center_offsets_head': jax.random.normal(
            keys[2], (BATCH, 2, MAP_H, MAP_W), jnp.float32),
        'reid_head': jax.random.normal(
            keys[3], (BATCH, EMB_DIM, MAP_H, MAP_W), jnp.float32),
    }
    cls_w = 0.05 * jax.random.normal(keys[4], (NUM_CLASSES, EMB_DIM), jnp.float32)
    cls_b = 0.01 * jax.random.normal(keys[5], (NUM_CLASSES,), jnp.float32)

    # ground truth: (batch, max_boxes, 5) rows = [class/track id, xc, yc, w, h]
    tids = jax.random.randint(
        keys[6], (BATCH, MAX_BOXES, 1), 1, NUM_CLASSES + 1).astype(jnp.float32)
    cxy = jax.random.uniform(
        keys[7], (BATCH, MAX_BOXES, 2), minval=0.05, maxval=0.95)
    wh = jax.random.uniform(
        keys[8], (BATCH, MAX_BOXES, 2), minval=0.05, maxval=0.30)
    gt = jnp.concatenate([tids, cxy, wh], axis=-1)
    # make the last box of sample 1 an empty (all-zero) row to exercise masking
    gt = gt.at[1, MAX_BOXES - 1].set(0.0)

    loss_fn = make_fairmot_loss(NUM_CLASSES, INPUT_SHAPE[1:])
    losses = loss_fn(pred, gt, cls_w, cls_b)
    losses = jax.block_until_ready(losses)

    print("KERNEL_OK")
</pallas_src>

<mosaic_0001>
module attributes {stable_mosaic.version = 11 : i64} {
  func.func @_fairmot_loss_kernel(%arg0: i32, %arg1: memref<1x20x20xf32, #tpu.memory_space<vmem>>, %arg2: memref<1x16x16xf32, #tpu.memory_space<vmem>>, %arg3: memref<1x4x256xf32, #tpu.memory_space<vmem>>, %arg4: memref<1x4x256xf32, #tpu.memory_space<vmem>>, %arg5: memref<1x1x256xf32, #tpu.memory_space<vmem>>, %arg6: memref<1x8x128xf32, #tpu.memory_space<vmem>>, %arg7: memref<1x8x1xi32, #tpu.memory_space<vmem>>, %arg8: memref<1x8x1xf32, #tpu.memory_space<vmem>>, %arg9: memref<128x10xf32, #tpu.memory_space<vmem>>, %arg10: memref<1x10xf32, #tpu.memory_space<vmem>>, %arg11: memref<1x1x128xf32, #tpu.memory_space<vmem>>) attributes {dimension_semantics = [#tpu.dimension_semantics<parallel>], iteration_bounds = array<i64: 2>, scalar_prefetch = 0 : i64, scratch_operands = 0 : i64, tpu.core_type = #tpu.core_type<tc>, window_params = [{transform_indices = @transform_0, window_bounds = array<i64: 1, 20, 20>}, {transform_indices = @transform_1, window_bounds = array<i64: 1, 16, 16>}, {transform_indices = @transform_2, window_bounds = array<i64: 1, 4, 256>}, {transform_indices = @transform_3, window_bounds = array<i64: 1, 4, 256>}, {transform_indices = @transform_4, window_bounds = array<i64: 1, 1, 256>}, {transform_indices = @transform_5, window_bounds = array<i64: 1, 8, 128>}, {transform_indices = @transform_6, window_bounds = array<i64: 1, 8, 1>}, {transform_indices = @transform_7, window_bounds = array<i64: 1, 8, 1>}, {pipeline_mode = #tpu.pipeline_mode<synchronous>, transform_indices = @transform_8, window_bounds = array<i64: 128, 10>}, {pipeline_mode = #tpu.pipeline_mode<synchronous>, transform_indices = @transform_9, window_bounds = array<i64: 1, 10>}, {transform_indices = @transform_10, window_bounds = array<i64: 1, 1, 128>}]} {
    %c0 = arith.constant 0 : index
    %c0_0 = arith.constant 0 : index
    %c0_1 = arith.constant 0 : index
    %0 = vector.load %arg1[%c0, %c0_0, %c0_1] : memref<1x20x20xf32, #tpu.memory_space<vmem>>, vector<1x20x20xf32>
    %1 = vector.shape_cast %0 : vector<1x20x20xf32> to vector<20x20xf32>
    %2 = vector.extract_strided_slice %1 {offsets = [0, 0], sizes = [20, 16], strides = [1, 1]} : vector<20x20xf32> to vector<20x16xf32>
    %cst = arith.constant 0.800737381 : f32
    %3 = vector.broadcast %cst : f32 to vector<20x16xf32>
    %4 = arith.mulf %2, %3 : vector<20x16xf32>
    %5 = vector.extract_strided_slice %1 {offsets = [0, 1], sizes = [20, 16], strides = [1, 1]} : vector<20x20xf32> to vector<20x16xf32>
    %cst_2 = arith.constant 0.945959448 : f32
    %6 = vector.broadcast %cst_2 : f32 to vector<20x16xf32>
    %7 = arith.mulf %5, %6 : vector<20x16xf32>
    %8 = arith.addf %4, %7 : vector<20x16xf32>
    %9 = vector.extract_strided_slice %1 {offsets = [0, 2], sizes = [20, 16], strides = [1, 1]} : vector<20x20xf32> to vector<20x16xf32>
    %cst_3 = arith.constant 1.000000e+00 : f32
    %10 = vector.broadcast %cst_3 : f32 to vector<20x16xf32>
    %11 = arith.mulf %9, %10 : vector<20x16xf32>
    %12 = arith.addf %8, %11 : vector<20x16xf32>
    %13 = vector.extract_strided_slice %1 {offsets = [0, 3], sizes = [20, 16], strides = [1, 1]} : vector<20x20xf32> to vector<20x16xf32>
    %cst_4 = arith.constant 0.945959448 : f32
    %14 = vector.broadcast %cst_4 : f32 to vector<20x16xf32>
    %15 = arith.mulf %13, %14 : vector<20x16xf32>
    %16 = arith.addf %12, %15 : vector<20x16xf32>
    %17 = vector.extract_strided_slice %1 {offsets = [0, 4], sizes = [20, 16], strides = [1, 1]} : vector<20x20xf32> to vector<20x16xf32>
    %cst_5 = arith.constant 0.800737381 : f32
    %18 = vector.broadcast %cst_5 : f32 to vector<20x16xf32>
    %19 = arith.mulf %17, %18 : vector<20x16xf32>
    %20 = arith.addf %16, %19 : vector<20x16xf32>
    %21 = vector.extract_strided_slice %20 {offsets = [0, 0], sizes = [16, 16], strides = [1, 1]} : vector<20x16xf32> to vector<16x16xf32>
    %cst_6 = arith.constant 0.800737381 : f32
    %22 = vector.broadcast %cst_6 : f32 to vector<16x16xf32>
    %23 = arith.mulf %21, %22 : vector<16x16xf32>
    %24 = vector.extract_strided_slice %20 {offsets = [1, 0], sizes = [16, 16], strides = [1, 1]} : vector<20x16xf32> to vector<16x16xf32>
    %cst_7 = arith.constant 0.945959448 : f32
    %25 = vector.broadcast %cst_7 : f32 to vector<16x16xf32>
    %26 = arith.mulf %24, %25 : vector<16x16xf32>
    %27 = arith.addf %23, %26 : vector<16x16xf32>
    %28 = vector.extract_strided_slice %20 {offsets = [2, 0], sizes = [16, 16], strides = [1, 1]} : vector<20x16xf32> to vector<16x16xf32>
    %cst_8 = arith.constant 1.000000e+00 : f32
    %29 = vector.broadcast %cst_8 : f32 to vector<16x16xf32>
    %30 = arith.mulf %28, %29 : vector<16x16xf32>
    %31 = arith.addf %27, %30 : vector<16x16xf32>
    %32 = vector.extract_strided_slice %20 {offsets = [3, 0], sizes = [16, 16], strides = [1, 1]} : vector<20x16xf32> to vector<16x16xf32>
    %cst_9 = arith.constant 0.945959448 : f32
    %33 = vector.broadcast %cst_9 : f32 to vector<16x16xf32>
    %34 = arith.mulf %32, %33 : vector<16x16xf32>
    %35 = arith.addf %31, %34 : vector<16x16xf32>
    %36 = vector.extract_strided_slice %20 {offsets = [4, 0], sizes = [16, 16], strides = [1, 1]} : vector<20x16xf32> to vector<16x16xf32>
    %cst_10 = arith.constant 0.800737381 : f32
    %37 = vector.broadcast %cst_10 : f32 to vector<16x16xf32>
    %38 = arith.mulf %36, %37 : vector<16x16xf32>
    %39 = arith.addf %35, %38 : vector<16x16xf32>
    %c0_11 = arith.constant 0 : index
    %c0_12 = arith.constant 0 : index
    %c0_13 = arith.constant 0 : index
    %40 = vector.load %arg2[%c0_11, %c0_12, %c0_13] : memref<1x16x16xf32, #tpu.memory_space<vmem>>, vector<1x16x16xf32>
    %41 = vector.shape_cast %40 : vector<1x16x16xf32> to vector<16x16xf32>
    %cst_14 = arith.constant 0.000000e+00 : f32
    %42 = vector.broadcast %cst_14 : f32 to vector<16x16xf32>
    %43 = arith.subf %42, %41 : vector<16x16xf32>
    %cst_15 = arith.constant 0.000000e+00 : f32
    %44 = vector.broadcast %cst_15 : f32 to vector<16x16xf32>
    %45 = arith.maximumf %43, %44 : vector<16x16xf32>
    %46 = math.absf %41 : vector<16x16xf32>
    %cst_16 = arith.constant 0.000000e+00 : f32
    %47 = vector.broadcast %cst_16 : f32 to vector<16x16xf32>
    %48 = arith.subf %47, %46 : vector<16x16xf32>
    %49 = math.exp %48 : vector<16x16xf32>
    %cst_17 = arith.constant 1.000000e+00 : f32
    %50 = vector.broadcast %cst_17 : f32 to vector<16x16xf32>
    %51 = arith.addf %50, %49 : vector<16x16xf32>
    %52 = math.log %51 : vector<16x16xf32>
    %53 = arith.addf %45, %52 : vector<16x16xf32>
    %cst_18 = arith.constant 0.000000e+00 : f32
    %54 = vector.broadcast %cst_18 : f32 to vector<16x16xf32>
    %55 = arith.subf %54, %53 : vector<16x16xf32>
    %cst_19 = arith.constant -9.21034049 : f32
    %cst_20 = arith.constant -1.000050e-04 : f32
    %56 = vector.broadcast %cst_19 : f32 to vector<16x16xf32>
    %57 = arith.maximumf %56, %55 : vector<16x16xf32>
    %58 = vector.broadcast %cst_20 : f32 to vector<16x16xf32>
    %59 = arith.minimumf %58, %57 : vector<16x16xf32>
    %cst_21 = arith.constant 0.000000e+00 : f32
    %60 = vector.broadcast %cst_21 : f32 to vector<16x16xf32>
    %61 = arith.subf %60, %41 : vector<16x16xf32>
    %62 = arith.subf %61, %53 : vector<16x16xf32>
    %cst_22 = arith.constant -9.21034049 : f32
    %cst_23 = arith.constant -1.000050e-04 : f32
    %63 = vector.broadcast %cst_22 : f32 to vector<16x16xf32>
    %64 = arith.maximumf %63, %62 : vector<16x16xf32>
    %65 = vector.broadcast %cst_23 : f32 to vector<16x16xf32>
    %66 = arith.minimumf %65, %64 : vector<16x16xf32>
    %cst_24 = arith.constant 0.000000e+00 : f32
    %67 = vector.broadcast %cst_24 : f32 to vector<16x16xf32>
    %68 = arith.subf %67, %53 : vector<16x16xf32>
    %69 = math.exp %68 : vector<16x16xf32>
    %cst_25 = arith.constant 9.99999974E-5 : f32
    %cst_26 = arith.constant 0.999899983 : f32
    %70 = vector.broadcast %cst_25 : f32 to vector<16x16xf32>
    %71 = arith.maximumf %70, %69 : vector<16x16xf32>
    %72 = vector.broadcast %cst_26 : f32 to vector<16x16xf32>
    %73 = arith.minimumf %72, %71 : vector<16x16xf32>
    %cst_27 = arith.constant 1.000000e+00 : f32
    %74 = vector.broadcast %cst_27 : f32 to vector<16x16xf32>
    %75 = arith.cmpf oeq, %39, %74 : vector<16x16xf32>
    %76 = arith.extui %75 : vector<16x16xi1> to vector<16x16xi32>
    %77 = arith.sitofp %76 : vector<16x16xi32> to vector<16x16xf32>
    %cst_28 = arith.constant 1.000000e+00 : f32
    %78 = vector.broadcast %cst_28 : f32 to vector<16x16xf32>
    %79 = arith.cmpf olt, %39, %78 : vector<16x16xf32>
    %80 = arith.extui %79 : vector<16x16xi1> to vector<16x16xi32>
    %81 = arith.sitofp %80 : vector<16x16xi32> to vector<16x16xf32>
    %cst_29 = arith.constant 1.000000e+00 : f32
    %82 = vector.broadcast %cst_29 : f32 to vector<16x16xf32>
    %83 = arith.subf %82, %39 : vector<16x16xf32>
    %84 = arith.mulf %83, %83 : vector<16x16xf32>
    %85 = arith.mulf %83, %83 : vector<16x16xf32>
    %86 = arith.mulf %84, %85 : vector<16x16xf32>
    %cst_30 = arith.constant 1.000000e+00 : f32
    %87 = vector.broadcast %cst_30 : f32 to vector<16x16xf32>
    %88 = arith.subf %87, %73 : vector<16x16xf32>
    %89 = arith.mulf %88, %88 : vector<16x16xf32>
    %90 = arith.mulf %89, %59 : vector<16x16xf32>
    %91 = arith.mulf %90, %77 : vector<16x16xf32>
    %92 = vector.shape_cast %91 : vector<16x16xf32> to vector<1x16x16xf32>
    %cst_31 = arith.constant dense<0.000000e+00> : vector<1xf32>
    %93 = vector.multi_reduction <add>, %92, %cst_31 [1, 2] : vector<1x16x16xf32> to vector<1xf32>
    %94 = vector.shape_cast %93 : vector<1xf32> to vector<1x1x1xf32>
    %95 = vector.extract %94[0, 0, 0] : f32 from vector<1x1x1xf32>
    %96 = arith.mulf %73, %73 : vector<16x16xf32>
    %97 = arith.mulf %86, %96 : vector<16x16xf32>
    %98 = arith.mulf %97, %66 : vector<16x16xf32>
    %99 = arith.mulf %98, %81 : vector<16x16xf32>
    %100 = vector.shape_cast %99 : vector<16x16xf32> to vector<1x16x16xf32>
    %cst_32 = arith.constant dense<0.000000e+00> : vector<1xf32>
    %101 = vector.multi_reduction <add>, %100, %cst_32 [1, 2] : vector<1x16x16xf32> to vector<1xf32>
    %102 = vector.shape_cast %101 : vector<1xf32> to vector<1x1x1xf32>
    %103 = vector.extract %102[0, 0, 0] : f32 from vector<1x1x1xf32>
    %104 = vector.shape_cast %77 : vector<16x16xf32> to vector<1x16x16xf32>
    %cst_33 = arith.constant dense<0.000000e+00> : vector<1xf32>
    %105 = vector.multi_reduction <add>, %104, %cst_33 [1, 2] : vector<1x16x16xf32> to vector<1xf32>
    %106 = vector.shape_cast %105 : vector<1xf32> to vector<1x1x1xf32>
    %107 = vector.extract %106[0, 0, 0] : f32 from vector<1x1x1xf32>
    %c0_34 = arith.constant 0 : index
    %c0_35 = arith.constant 0 : index
    %c0_36 = arith.constant 0 : index
    %108 = vector.load %arg3[%c0_34, %c0_35, %c0_36] : memref<1x4x256xf32, #tpu.memory_space<vmem>>, vector<1x4x256xf32>
    %109 = vector.shape_cast %108 : vector<1x4x256xf32> to vector<4x256xf32>
    %c0_37 = arith.constant 0 : index
    %c0_38 = arith.constant 0 : index
    %c0_39 = arith.constant 0 : index
    %110 = vector.load %arg4[%c0_37, %c0_38, %c0_39] : memref<1x4x256xf32, #tpu.memory_space<vmem>>, vector<1x4x256xf32>
    %111 = vector.shape_cast %110 : vector<1x4x256xf32> to vector<4x256xf32>
    %112 = arith.subf %109, %111 : vector<4x256xf32>
    %113 = math.absf %112 : vector<4x256xf32>
    %c0_40 = arith.constant 0 : index
    %c0_41 = arith.constant 0 : index
    %c0_42 = arith.constant 0 : index
    %114 = vector.load %arg5[%c0_40, %c0_41, %c0_42] : memref<1x1x256xf32, #tpu.memory_space<vmem>>, vector<1x1x256xf32>
    %115 = vector.shape_cast %114 : vector<1x1x256xf32> to vector<1x256xf32>
    %116 = vector.broadcast %115 : vector<1x256xf32> to vector<4x256xf32>
    %117 = arith.mulf %113, %116 : vector<4x256xf32>
    %118 = vector.extract_strided_slice %117 {offsets = [0, 0], sizes = [2, 256], strides = [1, 1]} : vector<4x256xf32> to vector<2x256xf32>
    %119 = vector.shape_cast %118 : vector<2x256xf32> to vector<1x2x256xf32>
    %cst_43 = arith.constant dense<0.000000e+00> : vector<1xf32>
    %120 = vector.multi_reduction <add>, %119, %cst_43 [1, 2] : vector<1x2x256xf32> to vector<1xf32>
    %121 = vector.shape_cast %120 : vector<1xf32> to vector<1x1x1xf32>
    %122 = vector.extract %121[0, 0, 0] : f32 from vector<1x1x1xf32>
    %123 = vector.extract_strided_slice %117 {offsets = [2, 0], sizes = [2, 256], strides = [1, 1]} : vector<4x256xf32> to vector<2x256xf32>
    %124 = vector.shape_cast %123 : vector<2x256xf32> to vector<1x2x256xf32>
    %cst_44 = arith.constant dense<0.000000e+00> : vector<1xf32>
    %125 = vector.multi_reduction <add>, %124, %cst_44 [1, 2] : vector<1x2x256xf32> to vector<1xf32>
    %126 = vector.shape_cast %125 : vector<1xf32> to vector<1x1x1xf32>
    %127 = vector.extract %126[0, 0, 0] : f32 from vector<1x1x1xf32>
    %c0_45 = arith.constant 0 : index
    %c0_46 = arith.constant 0 : index
    %c0_47 = arith.constant 0 : index
    %128 = vector.load %arg6[%c0_45, %c0_46, %c0_47] : memref<1x8x128xf32, #tpu.memory_space<vmem>>, vector<1x8x128xf32>
    %129 = vector.shape_cast %128 : vector<1x8x128xf32> to vector<8x128xf32>
    %c0_48 = arith.constant 0 : index
    %c0_49 = arith.constant 0 : index
    %130 = vector.load %arg9[%c0_48, %c0_49] : memref<128x10xf32, #tpu.memory_space<vmem>>, vector<128x10xf32>
    %cst_50 = arith.constant dense<0.000000e+00> : vector<8x10xf32>
    %131 = tpu.matmul %129, %130, %cst_50 {dimension_numbers = #tpu.dot_dimension_numbers<[1], [0], [0], [1], [0, 0, 1, 1], [], []>} : vector<8x128xf32>, vector<128x10xf32>, vector<8x10xf32> -> vector<8x10xf32>
    %c0_51 = arith.constant 0 : index
    %c0_52 = arith.constant 0 : index
    %132 = vector.load %arg10[%c0_51, %c0_52] : memref<1x10xf32, #tpu.memory_space<vmem>>, vector<1x10xf32>
    %133 = vector.broadcast %132 : vector<1x10xf32> to vector<8x10xf32>
    %134 = arith.addf %131, %133 : vector<8x10xf32>
    %cst_53 = arith.constant dense<0xFF800000> : vector<8xf32>
    %135 = vector.multi_reduction <maximumf>, %134, %cst_53 [1] : vector<8x10xf32> to vector<8xf32>
    %136 = vector.shape_cast %135 : vector<8xf32> to vector<8x1xf32>
    %137 = vector.broadcast %136 : vector<8x1xf32> to vector<8x10xf32>
    %138 = arith.subf %134, %137 : vector<8x10xf32>
    %139 = math.exp %138 : vector<8x10xf32>
    %cst_54 = arith.constant dense<0.000000e+00> : vector<8xf32>
    %140 = vector.multi_reduction <add>, %139, %cst_54 [1] : vector<8x10xf32> to vector<8xf32>
    %141 = vector.shape_cast %140 : vector<8xf32> to vector<8x1xf32>
    %142 = math.log %141 : vector<8x1xf32>
    %143 = arith.addf %136, %142 : vector<8x1xf32>
    %144 = tpu.iota {dimensions = array<i32: 1>} : vector<8x10xi32>
    %c0_55 = arith.constant 0 : index
    %c0_56 = arith.constant 0 : index
    %c0_57 = arith.constant 0 : index
    %145 = vector.load %arg7[%c0_55, %c0_56, %c0_57] : memref<1x8x1xi32, #tpu.memory_space<vmem>>, vector<1x8x1xi32>
    %146 = vector.shape_cast %145 : vector<1x8x1xi32> to vector<8x1xi32>
    %147 = vector.broadcast %146 : vector<8x1xi32> to vector<8x10xi32>
    %148 = arith.cmpi eq, %144, %147 : vector<8x10xi32>
    %149 = arith.extui %148 : vector<8x10xi1> to vector<8x10xi32>
    %150 = arith.sitofp %149 : vector<8x10xi32> to vector<8x10xf32>
    %151 = arith.mulf %134, %150 : vector<8x10xf32>
    %cst_58 = arith.constant dense<0.000000e+00> : vector<8xf32>
    %152 = vector.multi_reduction <add>, %151, %cst_58 [1] : vector<8x10xf32> to vector<8xf32>
    %153 = vector.shape_cast %152 : vector<8xf32> to vector<8x1xf32>
    %154 = arith.subf %143, %153 : vector<8x1xf32>
    %c0_59 = arith.constant 0 : index
    %c0_60 = arith.constant 0 : index
    %c0_61 = arith.constant 0 : index
    %155 = vector.load %arg8[%c0_59, %c0_60, %c0_61] : memref<1x8x1xf32, #tpu.memory_space<vmem>>, vector<1x8x1xf32>
    %156 = vector.shape_cast %155 : vector<1x8x1xf32> to vector<8x1xf32>
    %157 = arith.mulf %154, %156 : vector<8x1xf32>
    %158 = vector.shape_cast %157 : vector<8x1xf32> to vector<1x8x1xf32>
    %cst_62 = arith.constant dense<0.000000e+00> : vector<1xf32>
    %159 = vector.multi_reduction <add>, %158, %cst_62 [1, 2] : vector<1x8x1xf32> to vector<1xf32>
    %160 = vector.shape_cast %159 : vector<1xf32> to vector<1x1x1xf32>
    %161 = vector.extract %160[0, 0, 0] : f32 from vector<1x1x1xf32>
    %162 = tpu.iota {dimensions = array<i32: 2>} : vector<1x1x128xi32>
    %c0_i32 = arith.constant 0 : i32
    %163 = vector.broadcast %c0_i32 : i32 to vector<1x1x128xi32>
    %164 = arith.cmpi eq, %162, %163 : vector<1x1x128xi32>
    %cst_63 = arith.constant 0.000000e+00 : f32
    %165 = vector.broadcast %95 : f32 to vector<1x1x128xf32>
    %166 = vector.broadcast %cst_63 : f32 to vector<1x1x128xf32>
    %167 = arith.select %164, %165, %166 : vector<1x1x128xi1>, vector<1x1x128xf32>
    %c1_i32 = arith.constant 1 : i32
    %168 = vector.broadcast %c1_i32 : i32 to vector<1x1x128xi32>
    %169 = arith.cmpi eq, %162, %168 : vector<1x1x128xi32>
    %170 = vector.broadcast %103 : f32 to vector<1x1x128xf32>
    %171 = arith.select %169, %170, %167 : vector<1x1x128xi1>, vector<1x1x128xf32>
    %c2_i32 = arith.constant 2 : i32
    %172 = vector.broadcast %c2_i32 : i32 to vector<1x1x128xi32>
    %173 = arith.cmpi eq, %162, %172 : vector<1x1x128xi32>
    %174 = vector.broadcast %107 : f32 to vector<1x1x128xf32>
    %175 = arith.select %173, %174, %171 : vector<1x1x128xi1>, vector<1x1x128xf32>
    %c3_i32 = arith.constant 3 : i32
    %176 = vector.broadcast %c3_i32 : i32 to vector<1x1x128xi32>
    %177 = arith.cmpi eq, %162, %176 : vector<1x1x128xi32>
    %178 = vector.broadcast %122 : f32 to vector<1x1x128xf32>
    %179 = arith.select %177, %178, %175 : vector<1x1x128xi1>, vector<1x1x128xf32>
    %c4_i32 = arith.constant 4 : i32
    %180 = vector.broadcast %c4_i32 : i32 to vector<1x1x128xi32>
    %181 = arith.cmpi eq, %162, %180 : vector<1x1x128xi32>
    %182 = vector.broadcast %127 : f32 to vector<1x1x128xf32>
    %183 = arith.select %181, %182, %179 : vector<1x1x128xi1>, vector<1x1x128xf32>
    %c5_i32 = arith.constant 5 : i32
    %184 = vector.broadcast %c5_i32 : i32 to vector<1x1x128xi32>
    %185 = arith.cmpi eq, %162, %184 : vector<1x1x128xi32>
    %186 = vector.broadcast %161 : f32 to vector<1x1x128xf32>
    %187 = arith.select %185, %186, %183 : vector<1x1x128xi1>, vector<1x1x128xf32>
    %c0_64 = arith.constant 0 : index
    %c0_65 = arith.constant 0 : index
    %c0_66 = arith.constant 0 : index
    %188 = vector.load %arg11[%c0_64, %c0_65, %c0_66] : memref<1x1x128xf32, #tpu.memory_space<vmem>>, vector<1x1x128xf32>
    tpu.vector_store %arg11[%c0_64, %c0_65, %c0_66], %187 {strides = array<i32>} : memref<1x1x128xf32, #tpu.memory_space<vmem>>, vector<1x1x128xf32>,
    return
  }
  func.func @transform_0(%arg0: i32) -> (i32, i32, i32) {
    %c0_i32 = arith.constant 0 : i32
    %c0_i32_0 = arith.constant 0 : i32
    %c0_i32_1 = arith.constant 0 : i32
    return %arg0, %c0_i32, %c0_i32_0 : i32, i32, i32
  }
  func.func @transform_1(%arg0: i32) -> (i32, i32, i32) {
    %c0_i32 = arith.constant 0 : i32
    %c0_i32_0 = arith.constant 0 : i32
    %c0_i32_1 = arith.constant 0 : i32
    return %arg0, %c0_i32, %c0_i32_0 : i32, i32, i32
  }
  func.func @transform_2(%arg0: i32) -> (i32, i32, i32) {
    %c0_i32 = arith.constant 0 : i32
    %c0_i32_0 = arith.constant 0 : i32
    %c0_i32_1 = arith.constant 0 : i32
    return %arg0, %c0_i32, %c0_i32_0 : i32, i32, i32
  }
  func.func @transform_3(%arg0: i32) -> (i32, i32, i32) {
    %c0_i32 = arith.constant 0 : i32
    %c0_i32_0 = arith.constant 0 : i32
    %c0_i32_1 = arith.constant 0 : i32
    return %arg0, %c0_i32, %c0_i32_0 : i32, i32, i32
  }
  func.func @transform_4(%arg0: i32) -> (i32, i32, i32) {
    %c0_i32 = arith.constant 0 : i32
    %c0_i32_0 = arith.constant 0 : i32
    %c0_i32_1 = arith.constant 0 : i32
    return %arg0, %c0_i32, %c0_i32_0 : i32, i32, i32
  }
  func.func @transform_5(%arg0: i32) -> (i32, i32, i32) {
    %c0_i32 = arith.constant 0 : i32
    %c0_i32_0 = arith.constant 0 : i32
    %c0_i32_1 = arith.constant 0 : i32
    return %arg0, %c0_i32, %c0_i32_0 : i32, i32, i32
  }
  func.func @transform_6(%arg0: i32) -> (i32, i32, i32) {
    %c0_i32 = arith.constant 0 : i32
    %c0_i32_0 = arith.constant 0 : i32
    %c0_i32_1 = arith.constant 0 : i32
    return %arg0, %c0_i32, %c0_i32_0 : i32, i32, i32
  }
  func.func @transform_7(%arg0: i32) -> (i32, i32, i32) {
    %c0_i32 = arith.constant 0 : i32
    %c0_i32_0 = arith.constant 0 : i32
    %c0_i32_1 = arith.constant 0 : i32
    return %arg0, %c0_i32, %c0_i32_0 : i32, i32, i32
  }
  func.func @transform_8(%arg0: i32) -> (i32, i32) {
    %c0_i32 = arith.constant 0 : i32
    %c0_i32_0 = arith.constant 0 : i32
    %c0_i32_1 = arith.constant 0 : i32
    return %c0_i32, %c0_i32_0 : i32, i32
  }
  func.func @transform_9(%arg0: i32) -> (i32, i32) {
    %c0_i32 = arith.constant 0 : i32
    %c0_i32_0 = arith.constant 0 : i32
    %c0_i32_1 = arith.constant 0 : i32
    return %c0_i32, %c0_i32_0 : i32, i32
  }
  func.func @transform_10(%arg0: i32) -> (i32, i32, i32) {
    %c0_i32 = arith.constant 0 : i32
    %c0_i32_0 = arith.constant 0 : i32
    %c0_i32_1 = arith.constant 0 : i32
    return %arg0, %c0_i32, %c0_i32_0 : i32, i32, i32
  }
}

</mosaic_0001>

<llo_original>
// kernel: loss_fn.1
$region0: #{loss_fn.1}
  #allocation0 [shape = 'u32[]', space=smem, size = 0x4, offset = 0x4, fixed_abs, tag = 'smem constant byte address 0x4 - core index']
  #allocation1 [shape = 'u32[144,128]{1,0:T(1,128)}', space=vmem, size = 0x12000, scoped, tag = 'internal scratch']
  %s0 = inlined_call_operand.vmem [shape: f32[2,20,20], index: 0, kind: input, shape index: {}]
  %s1 = inlined_call_operand.vmem [shape: f32[2,16,16], index: 1, kind: input, shape index: {}]
  %s2 = inlined_call_operand.vmem [shape: f32[2,4,256], index: 2, kind: input, shape index: {}]
  %s3 = inlined_call_operand.vmem [shape: f32[2,4,256], index: 3, kind: input, shape index: {}]
  %s4 = inlined_call_operand.vmem [shape: f32[2,1,256], index: 4, kind: input, shape index: {}]
  %s5 = inlined_call_operand.vmem [shape: f32[2,8,128], index: 5, kind: input, shape index: {}]
  %s6 = inlined_call_operand.vmem [shape: s32[2,8,1], index: 6, kind: input, shape index: {}]
  %s7 = inlined_call_operand.vmem [shape: f32[2,8,1], index: 7, kind: input, shape index: {}]
  %s8 = inlined_call_operand.vmem [shape: f32[128,10], index: 8, kind: input, shape index: {}]
  %s9 = inlined_call_operand.vmem [shape: f32[1,10], index: 9, kind: input, shape index: {}]
  %s10 = inlined_call_operand.vmem [shape: f32[2,1,128], index: 10, kind: output, shape index: {}]
  %s11 = sld [smem:[#allocation0]]
  $region73: #{loss_fn.1} parent=0
    _
  %s13 = ssub.s32 1, %s11
  %s14 = scalar_select 0, %s13, %s11
  loop: start=0, step=1, limit=4
  $region2: #{loss_fn.1} parent=0 // loop_pre_header
    _
  $region3: #{loss_fn.1} parent=0 // loop_header
    %s16 = sphi 0, %s20
    %p17 = scmp.ge.s32.totalorder %s16, 4
    %s26 = sphi 0, %s28
    %s29 = sphi 0, %s26
    %s30 = sphi 0, %s29
    %s46 = sphi 0, %s30
    %s52 = sphi 0, %s54
    %s55 = sphi 0, %s52
    %s56 = sphi 0, %s55
    %s72 = sphi 0, %s56
    %s78 = sphi 0, %s80
    %s81 = sphi 0, %s78
    %s82 = sphi 0, %s81
    %s98 = sphi 0, %s82
    %s104 = sphi 0, %s106
    %s107 = sphi 0, %s104
    %s108 = sphi 0, %s107
    %s124 = sphi 0, %s108
    %s130 = sphi 0, %s132
    %s133 = sphi 0, %s130
    %s134 = sphi 0, %s133
    %s150 = sphi 0, %s134
    %s156 = sphi 0, %s158
    %s159 = sphi 0, %s156
    %s160 = sphi 0, %s159
    %s176 = sphi 0, %s160
    %s182 = sphi 0, %s184
    %s185 = sphi 0, %s182
    %s186 = sphi 0, %s185
    %s202 = sphi 0, %s186
    %s208 = sphi 0, %s210
    %s211 = sphi 0, %s208
    %s212 = sphi 0, %s211
    %s228 = sphi 0, %s212
    %s232 = sphi 0, %s232
    %s234 = sphi 0, %s232
    %s235 = sphi 0, %s234
    %s249 = sphi 0, %s235
    %s253 = sphi 0, %s253
    %s255 = sphi 0, %s253
    %s256 = sphi 0, %s255
    %s270 = sphi 0, %s256
    %s276 = sphi 0, %s278
    %s279 = sphi 0, %s276
    %s280 = sphi 0, %s279
    %s296 = sphi 0, %s280
  $region4: #{loss_fn.1} parent=0 // loop_header_branch
    %19 = sbr.rel (%p17) target = $region8
  $region5: #{loss_fn.1} parent=0 // loop_body
    %s21 = ssub.s32 %s16, 1
    %s22 = ssub.s32 %s16, 2
    %s23 = sadd.s32 %s16, 1
    %s24 = ssub.s32 %s16, %s23
    %p25 = scmp.eq.s32.totalorder %s24, 0
    %s27 = sadd.s32 %s26, 1
    %s28 = scalar_select %p25, %s26, %s27
    %p31 = pneg %p25
    %p32 = scmp.eq.s32.totalorder %s16, 1
    %p33 = por %p31, %p32
    %p34 = scmp.ne.s32.totalorder %s26, %s29
    %p35 = scmp.eq.s32.totalorder %s16, 0
    %p36 = por %p34, %p35
    %p37 = scmp.ne.s32.totalorder %s26, %s29
    %p38 = scmp.eq.s32.totalorder %s21, 1
    %p39 = por %p37, %p38
    %p40 = scmp.ne.s32.totalorder %s29, %s30
    %p41 = scmp.eq.s32.totalorder %s21, 0
    %p42 = por %p40, %p41
    %p43 = scmp.ne.s32.totalorder %s29, %s30
    %p44 = scmp.eq.s32.totalorder %s22, 1
    %p45 = por %p43, %p44
    %p47 = scmp.ne.s32.totalorder %s30, %s46
    %p48 = scmp.eq.s32.totalorder %s22, 0
    %p49 = por %p47, %p48
    %s50 = ssub.s32 %s16, %s23
    %p51 = scmp.eq.s32.totalorder %s50, 0
    %s53 = sadd.s32 %s52, 1
    %s54 = scalar_select %p51, %s52, %s53
    %p57 = pneg %p51
    %p58 = scmp.eq.s32.totalorder %s16, 1
    %p59 = por %p57, %p58
    %p60 = scmp.ne.s32.totalorder %s52, %s55
    %p61 = scmp.eq.s32.totalorder %s16, 0
    %p62 = por %p60, %p61
    %p63 = scmp.ne.s32.totalorder %s52, %s55
    %p64 = scmp.eq.s32.totalorder %s21, 1
    %p65 = por %p63, %p64
    %p66 = scmp.ne.s32.totalorder %s55, %s56
    %p67 = scmp.eq.s32.totalorder %s21, 0
    %p68 = por %p66, %p67
    %p69 = scmp.ne.s32.totalorder %s55, %s56
    %p70 = scmp.eq.s32.totalorder %s22, 1
    %p71 = por %p69, %p70
    %p73 = scmp.ne.s32.totalorder %s56, %s72
    %p74 = scmp.eq.s32.totalorder %s22, 0
    %p75 = por %p73, %p74
    %s76 = ssub.s32 %s16, %s23
    %p77 = scmp.eq.s32.totalorder %s76, 0
    %s79 = sadd.s32 %s78, 1
    %s80 = scalar_select %p77, %s78, %s79
    %p83 = pneg %p77
    %p84 = scmp.eq.s32.totalorder %s16, 1
    %p85 = por %p83, %p84
    %p86 = scmp.ne.s32.totalorder %s78, %s81
    %p87 = scmp.eq.s32.totalorder %s16, 0
    %p88 = por %p86, %p87
    %p89 = scmp.ne.s32.totalorder %s78, %s81
    %p90 = scmp.eq.s32.totalorder %s21, 1
    %p91 = por %p89, %p90
    %p92 = scmp.ne.s32.totalorder %s81, %s82
    %p93 = scmp.eq.s32.totalorder %s21, 0
    %p94 = por %p92, %p93
    %p95 = scmp.ne.s32.totalorder %s81, %s82
    %p96 = scmp.eq.s32.totalorder %s22, 1
    %p97 = por %p95, %p96
    %p99 = scmp.ne.s32.totalorder %s82, %s98
    %p100 = scmp.eq.s32.totalorder %s22, 0
    %p101 = por %p99, %p100
    %s102 = ssub.s32 %s16, %s23
    %p103 = scmp.eq.s32.totalorder %s102, 0
    %s105 = sadd.s32 %s104, 1
    %s106 = scalar_select %p103, %s104, %s105
    %p109 = pneg %p103
    %p110 = scmp.eq.s32.totalorder %s16, 1
    %p111 = por %p109, %p110
    %p112 = scmp.ne.s32.totalorder %s104, %s107
    %p113 = scmp.eq.s32.totalorder %s16, 0
    %p114 = por %p112, %p113
    %p115 = scmp.ne.s32.totalorder %s104, %s107
    %p116 = scmp.eq.s32.totalorder %s21, 1
    %p117 = por %p115, %p116
    %p118 = scmp.ne.s32.totalorder %s107, %s108
    %p119 = scmp.eq.s32.totalorder %s21, 0
    %p120 = por %p118, %p119
    %p121 = scmp.ne.s32.totalorder %s107, %s108
    %p122 = scmp.eq.s32.totalorder %s22, 1
    %p123 = por %p121, %p122
    %p125 = scmp.ne.s32.totalorder %s108, %s124
    %p126 = scmp.eq.s32.totalorder %s22, 0
    %p127 = por %p125, %p126
    %s128 = ssub.s32 %s16, %s23
    %p129 = scmp.eq.s32.totalorder %s128, 0
    %s131 = sadd.s32 %s130, 1
    %s132 = scalar_select %p129, %s130, %s131
    %p135 = pneg %p129
    %p136 = scmp.eq.s32.totalorder %s16, 1
    %p137 = por %p135, %p136
    %p138 = scmp.ne.s32.totalorder %s130, %s133
    %p139 = scmp.eq.s32.totalorder %s16, 0
    %p140 = por %p138, %p139
    %p141 = scmp.ne.s32.totalorder %s130, %s133
    %p142 = scmp.eq.s32.totalorder %s21, 1
    %p143 = por %p141, %p142
    %p144 = scmp.ne.s32.totalorder %s133, %s134
    %p145 = scmp.eq.s32.totalorder %s21, 0
    %p146 = por %p144, %p145
    %p147 = scmp.ne.s32.totalorder %s133, %s134
    %p148 = scmp.eq.s32.totalorder %s22, 1
    %p149 = por %p147, %p148
    %p151 = scmp.ne.s32.totalorder %s134, %s150
    %p152 = scmp.eq.s32.totalorder %s22, 0
    %p153 = por %p151, %p152
    %s154 = ssub.s32 %s16, %s23
    %p155 = scmp.eq.s32.totalorder %s154, 0
    %s157 = sadd.s32 %s156, 1
    %s158 = scalar_select %p155, %s156, %s157
    %p161 = pneg %p155
    %p162 = scmp.eq.s32.totalorder %s16, 1
    %p163 = por %p161, %p162
    %p164 = scmp.ne.s32.totalorder %s156, %s159
    %p165 = scmp.eq.s32.totalorder %s16, 0
    %p166 = por %p164, %p165
    %p167 = scmp.ne.s32.totalorder %s156, %s159
    %p168 = scmp.eq.s32.totalorder %s21, 1
    %p169 = por %p167, %p168
    %p170 = scmp.ne.s32.totalorder %s159, %s160
    %p171 = scmp.eq.s32.totalorder %s21, 0
    %p172 = por %p170, %p171
    %p173 = scmp.ne.s32.totalorder %s159, %s160
    %p174 = scmp.eq.s32.totalorder %s22, 1
    %p175 = por %p173, %p174
    %p177 = scmp.ne.s32.totalorder %s160, %s176
    %p178 = scmp.eq.s32.totalorder %s22, 0
    %p179 = por %p177, %p178
    %s180 = ssub.s32 %s16, %s23
    %p181 = scmp.eq.s32.totalorder %s180, 0
    %s183 = sadd.s32 %s182, 1
    %s184 = scalar_select %p181, %s182, %s183
    %p187 = pneg %p181
    %p188 = scmp.eq.s32.totalorder %s16, 1
    %p189 = por %p187, %p188
    %p190 = scmp.ne.s32.totalorder %s182, %s185
    %p191 = scmp.eq.s32.totalorder %s16, 0
    %p192 = por %p190, %p191
    %p193 = scmp.ne.s32.totalorder %s182, %s185
    %p194 = scmp.eq.s32.totalorder %s21, 1
    %p195 = por %p193, %p194
    %p196 = scmp.ne.s32.totalorder %s185, %s186
    %p197 = scmp.eq.s32.totalorder %s21, 0
    %p198 = por %p196, %p197
    %p199 = scmp.ne.s32.totalorder %s185, %s186
    %p200 = scmp.eq.s32.totalorder %s22, 1
    %p201 = por %p199, %p200
    %p203 = scmp.ne.s32.totalorder %s186, %s202
    %p204 = scmp.eq.s32.totalorder %s22, 0
    %p205 = por %p203, %p204
    %s206 = ssub.s32 %s16, %s23
    %p207 = scmp.eq.s32.totalorder %s206, 0
    %s209 = sadd.s32 %s208, 1
    %s210 = scalar_select %p207, %s208, %s209
    %p213 = pneg %p207
    %p214 = scmp.eq.s32.totalorder %s16, 1
    %p215 = por %p213, %p214
    %p216 = scmp.ne.s32.totalorder %s208, %s211
    %p217 = scmp.eq.s32.totalorder %s16, 0
    %p218 = por %p216, %p217
    %p219 = scmp.ne.s32.totalorder %s208, %s211
    %p220 = scmp.eq.s32.totalorder %s21, 1
    %p221 = por %p219, %p220
    %p222 = scmp.ne.s32.totalorder %s211, %s212
    %p223 = scmp.eq.s32.totalorder %s21, 0
    %p224 = por %p222, %p223
    %p225 = scmp.ne.s32.totalorder %s211, %s212
    %p226 = scmp.eq.s32.totalorder %s22, 1
    %p227 = por %p225, %p226
    %p229 = scmp.ne.s32.totalorder %s212, %s228
    %p230 = scmp.eq.s32.totalorder %s22, 0
    %p231 = por %p229, %p230
    %s233 = sadd.s32 %s232, 1
    %p236 = scmp.eq.s32.totalorder %s16, 1
    %p237 = scmp.ne.s32.totalorder %s232, %s234
    %p238 = scmp.eq.s32.totalorder %s16, 0
    %p239 = por %p237, %p238
    %p240 = scmp.ne.s32.totalorder %s232, %s234
    %p241 = scmp.eq.s32.totalorder %s21, 1
    %p242 = por %p240, %p241
    %p243 = scmp.ne.s32.totalorder %s234, %s235
    %p244 = scmp.eq.s32.totalorder %s21, 0
    %p245 = por %p243, %p244
    %p246 = scmp.ne.s32.totalorder %s234, %s235
    %p247 = scmp.eq.s32.totalorder %s22, 1
    %p248 = por %p246, %p247
    %p250 = scmp.ne.s32.totalorder %s235, %s249
    %p251 = scmp.eq.s32.totalorder %s22, 0
    %p252 = por %p250, %p251
    %s254 = sadd.s32 %s253, 1
    %p257 = scmp.eq.s32.totalorder %s16, 1
    %p258 = scmp.ne.s32.totalorder %s253, %s255
    %p259 = scmp.eq.s32.totalorder %s16, 0
    %p260 = por %p258, %p259
    %p261 = scmp.ne.s32.totalorder %s253, %s255
    %p262 = scmp.eq.s32.totalorder %s21, 1
    %p263 = por %p261, %p262
    %p264 = scmp.ne.s32.totalorder %s255, %s256
    %p265 = scmp.eq.s32.totalorder %s21, 0
    %p266 = por %p264, %p265
    %p267 = scmp.ne.s32.totalorder %s255, %s256
    %p268 = scmp.eq.s32.totalorder %s22, 1
    %p269 = por %p267, %p268
    %p271 = scmp.ne.s32.totalorder %s256, %s270
    %p272 = scmp.eq.s32.totalorder %s22, 0
    %p273 = por %p271, %p272
    %s274 = ssub.s32 %s16, %s23
    %p275 = scmp.eq.s32.totalorder %s274, 0
    %s277 = sadd.s32 %s276, 1
    %s278 = scalar_select %p275, %s276, %s277
    %p281 = pneg %p275
    %p282 = scmp.eq.s32.totalorder %s16, 1
    %p283 = por %p281, %p282
    %p284 = scmp.ne.s32.totalorder %s276, %s279
    %p285 = scmp.eq.s32.totalorder %s16, 0
    %p286 = por %p284, %p285
    %p287 = scmp.ne.s32.totalorder %s276, %s279
    %p288 = scmp.eq.s32.totalorder %s21, 1
    %p289 = por %p287, %p288
    %p290 = scmp.ne.s32.totalorder %s279, %s280
    %p291 = scmp.eq.s32.totalorder %s21, 0
    %p292 = por %p290, %p291
    %p293 = scmp.ne.s32.totalorder %s279, %s280
    %p294 = scmp.eq.s32.totalorder %s22, 1
    %p295 = por %p293, %p294
    %p297 = scmp.ne.s32.totalorder %s280, %s296
    %p298 = scmp.eq.s32.totalorder %s22, 0
    %p299 = por %p297, %p298
    %p300 = scmp.le.s32.totalorder 1, %s16
    %p301 = scmp.lt.s32.totalorder %s16, 3
    %p302 = pnand %p300, %p301
    %p303 = pneg %p302
    // Predicated region
    $region9: #{loss_fn.1} parent=5 // pred_check
      _
    $region10: #{loss_fn.1} parent=5 // pred_check_branch
      %305 = sbr.rel (%p302) target = $region12
    $region11: #{loss_fn.1} parent=5 // pred_region
      %s306 = ssub.s32 %s16, 1
      // Predicated region
      $region13: #{loss_fn.1} parent=11 // pred_check
        %p307 = pneg %p245
      $region14: #{loss_fn.1} parent=11 // pred_check_branch
        %309 = sbr.rel (%p307) target = $region16
      $region15: #{loss_fn.1} parent=11 // pred_region
        _
      $region16: #{loss_fn.1} parent=11 // pred_fallthru
        _
      // Predicated region
      $region17: #{loss_fn.1} parent=11 // pred_check
        %p310 = pneg %p266
      $region18: #{loss_fn.1} parent=11 // pred_check_branch
        %312 = sbr.rel (%p310) target = $region20
      $region19: #{loss_fn.1} parent=11 // pred_region
        _
      $region20: #{loss_fn.1} parent=11 // pred_fallthru
        _
    $region12: #{loss_fn.1} parent=5 // pred_fallthru
      _
    %p313 = scmp.lt.s32.totalorder %s16, 2
    // Predicated region
    $region21: #{loss_fn.1} parent=5 // pred_check
      %p314 = pneg %p313
    $region22: #{loss_fn.1} parent=5 // pred_check_branch
      %316 = sbr.rel (%p314) target = $region24
    $region23: #{loss_fn.1} parent=5 // pred_region
      // Predicated region
      $region25: #{loss_fn.1} parent=23 // pred_check
        %p317 = pneg %p36
      $region26: #{loss_fn.1} parent=23 // pred_check_branch
        %319 = sbr.rel (%p317) target = $region28
      $region27: #{loss_fn.1} parent=23 // pred_region
        %p320 = scmp.lt.s32.totalorder %s16, 1
        %s321 = scalar_select %p320, %s16, 1
        %s322 = smul.addr %s321, 3
        %s323 = smul.addr %s322, 8
        %s324 = scalar_lea.vmem %s0, %s323
      $region28: #{loss_fn.1} parent=23 // pred_fallthru
        _
      // Predicated region
      $region29: #{loss_fn.1} parent=23 // pred_check
        %p325 = pneg %p62
      $region30: #{loss_fn.1} parent=23 // pred_check_branch
        %327 = sbr.rel (%p325) target = $region32
      $region31: #{loss_fn.1} parent=23 // pred_region
        %p328 = scmp.lt.s32.totalorder %s16, 1
        %s329 = scalar_select %p328, %s16, 1
        %s330 = smul.addr %s329, 2
        %s331 = smul.addr %s330, 8
        %s332 = scalar_lea.vmem %s1, %s331
      $region32: #{loss_fn.1} parent=23 // pred_fallthru
        _
      // Predicated region
      $region33: #{loss_fn.1} parent=23 // pred_check
        %p333 = pneg %p88
      $region34: #{loss_fn.1} parent=23 // pred_check_branch
        %335 = sbr.rel (%p333) target = $region36
      $region35: #{loss_fn.1} parent=23 // pred_region
        %p336 = scmp.lt.s32.totalorder %s16, 1
        %s337 = scalar_select %p336, %s16, 1
        %s338 = smul.addr %s337, 2
        %s339 = smul.addr %s338, 4
        %s340 = scalar_lea.vmem %s2, %s339
      $region36: #{loss_fn.1} parent=23 // pred_fallthru
        _
      // Predicated region
      $region37: #{loss_fn.1} parent=23 // pred_check
        %p341 = pneg %p114
      $region38: #{loss_fn.1} parent=23 // pred_check_branch
        %343 = sbr.rel (%p341) target = $region40
      $region39: #{loss_fn.1} parent=23 // pred_region
        %p344 = scmp.lt.s32.totalorder %s16, 1
        %s345 = scalar_select %p344, %s16, 1
        %s346 = smul.addr %s345, 2
        %s347 = smul.addr %s346, 4
        %s348 = scalar_lea.vmem %s3, %s347
      $region40: #{loss_fn.1} parent=23 // pred_fallthru
        _
      // Predicated region
      $region41: #{loss_fn.1} parent=23 // pred_check
        %p349 = pneg %p140
      $region42: #{loss_fn.1} parent=23 // pred_check_branch
        %351 = sbr.rel (%p349) target = $region44
      $region43: #{loss_fn.1} parent=23 // pred_region
        %p352 = scmp.lt.s32.totalorder %s16, 1
        %s353 = scalar_select %p352, %s16, 1
        %s354 = smul.addr %s353, 2
        %s355 = scalar_lea.vmem %s4, %s354
      $region44: #{loss_fn.1} parent=23 // pred_fallthru
        _
      // Predicated region
      $region45: #{loss_fn.1} parent=23 // pred_check
        %p356 = pneg %p166
      $region46: #{loss_fn.1} parent=23 // pred_check_branch
        %358 = sbr.rel (%p356) target = $region48
      $region47: #{loss_fn.1} parent=23 // pred_region
        %p359 = scmp.lt.s32.totalorder %s16, 1
        %s360 = scalar_select %p359, %s16, 1
        %s361 = smul.addr %s360, 8
        %s362 = scalar_lea.vmem %s5, %s361
      $region48: #{loss_fn.1} parent=23 // pred_fallthru
        _
      // Predicated region
      $region49: #{loss_fn.1} parent=23 // pred_check
        %p363 = pneg %p192
      $region50: #{loss_fn.1} parent=23 // pred_check_branch
        %365 = sbr.rel (%p363) target = $region52
      $region51: #{loss_fn.1} parent=23 // pred_region
        %p366 = scmp.lt.s32.totalorder %s16, 1
        %s367 = scalar_select %p366, %s16, 1
        %s368 = smul.addr %s367, 8
        %s369 = scalar_lea.vmem %s6, %s368
      $region52: #{loss_fn.1} parent=23 // pred_fallthru
        _
      // Predicated region
      $region53: #{loss_fn.1} parent=23 // pred_check
        %p370 = pneg %p218
      $region54: #{loss_fn.1} parent=23 // pred_check_branch
        %372 = sbr.rel (%p370) target = $region56
      $region55: #{loss_fn.1} parent=23 // pred_region
        %p373 = scmp.lt.s32.totalorder %s16, 1
        %s374 = scalar_select %p373, %s16, 1
        %s375 = smul.addr %s374, 8
        %s376 = scalar_lea.vmem %s7, %s375
      $region56: #{loss_fn.1} parent=23 // pred_fallthru
        _
    $region24: #{loss_fn.1} parent=5 // pred_fallthru
      _
    %p377 = scmp.le.s32.totalorder 1, %s16
    %p378 = scmp.lt.s32.totalorder %s16, 3
    %p379 = pnand %p377, %p378
    %p380 = pneg %p379
    // Predicated region
    $region57: #{loss_fn.1} parent=5 // pred_check
      _
    $region58: #{loss_fn.1} parent=5 // pred_check_branch
      %382 = sbr.rel (%p379) target = $region60
    $region59: #{loss_fn.1} parent=5 // pred_region
      %s383 = ssub.s32 %s16, 1
      %p384 = scmp.lt.s32.totalorder %s21, 1
      %s385 = scalar_select %p384, %s21, 1
      %s386 = smul.addr %s385, 3
      %s387 = smul.addr %s386, 8
      %s388 = scalar_lea.vmem %s0, %s387
      %p389 = pneg %p42
      %p390 = pneg %p39
      %p391 = scmp.lt.s32.totalorder %s21, 1
      %s392 = scalar_select %p391, %s21, 1
      %s393 = smul.addr %s392, 2
      %s394 = smul.addr %s393, 8
      %s395 = scalar_lea.vmem %s1, %s394
      %p396 = pneg %p68
      %p397 = pneg %p65
      %p398 = scmp.lt.s32.totalorder %s21, 1
      %s399 = scalar_select %p398, %s21, 1
      %s400 = smul.addr %s399, 2
      %s401 = smul.addr %s400, 4
      %s402 = scalar_lea.vmem %s2, %s401
      %p403 = pneg %p94
      %p404 = pneg %p91
      %p405 = scmp.lt.s32.totalorder %s21, 1
      %s406 = scalar_select %p405, %s21, 1
      %s407 = smul.addr %s406, 2
      %s408 = smul.addr %s407, 4
      %s409 = scalar_lea.vmem %s3, %s408
      %p410 = pneg %p120
      %p411 = pneg %p117
      %p412 = scmp.lt.s32.totalorder %s21, 1
      %s413 = scalar_select %p412, %s21, 1
      %s414 = smul.addr %s413, 2
      %s415 = scalar_lea.vmem %s4, %s414
      %p416 = pneg %p146
      %p417 = pneg %p143
      %p418 = scmp.lt.s32.totalorder %s21, 1
      %s419 = scalar_select %p418, %s21, 1
      %s420 = smul.addr %s419, 8
      %s421 = scalar_lea.vmem %s5, %s420
      %p422 = pneg %p172
      %p423 = pneg %p169
      %p424 = scmp.lt.s32.totalorder %s21, 1
      %s425 = scalar_select %p424, %s21, 1
      %s426 = smul.addr %s425, 8
      %s427 = scalar_lea.vmem %s6, %s426
      %p428 = pneg %p198
      %p429 = pneg %p195
      %p430 = scmp.lt.s32.totalorder %s21, 1
      %s431 = scalar_select %p430, %s21, 1
      %s432 = smul.addr %s431, 8
      %s433 = scalar_lea.vmem %s7, %s432
      %p434 = pneg %p224
      %p435 = pneg %p221
      %p436 = pneg %p245
      %p437 = pneg %p242
      %p438 = pneg %p266
      %p439 = pneg %p263
      %p440 = pneg %p292
      %p441 = pneg %p289
      %p442 = scmp.lt.s32.totalorder %s21, 1
      %s443 = scalar_select %p442, %s21, 1
      %s444 = scalar_lea.vmem %s10, %s443
      %p445 = scmp.lt.s32.totalorder %s21, 1
      %s446 = scalar_select %p445, %s21, 1
      %s447 = smul.addr %s446, 3
      %s448 = smul.addr %s447, 8
      %s449 = scalar_lea.vmem %s0, %s448
      %p450 = scmp.lt.s32.totalorder %s21, 1
      %s451 = scalar_select %p450, %s21, 1
      %s452 = smul.addr %s451, 2
      %s453 = smul.addr %s452, 8
      %s454 = scalar_lea.vmem %s1, %s453
      %p455 = scmp.lt.s32.totalorder %s21, 1
      %s456 = scalar_select %p455, %s21, 1
      %s457 = smul.addr %s456, 2
      %s458 = smul.addr %s457, 4
      %s459 = scalar_lea.vmem %s2, %s458
      %p460 = scmp.lt.s32.totalorder %s21, 1
      %s461 = scalar_select %p460, %s21, 1
      %s462 = smul.addr %s461, 2
      %s463 = smul.addr %s462, 4
      %s464 = scalar_lea.vmem %s3, %s463
      %p465 = scmp.lt.s32.totalorder %s21, 1
      %s466 = scalar_select %p465, %s21, 1
      %s467 = smul.addr %s466, 2
      %s468 = scalar_lea.vmem %s4, %s467
      %p469 = scmp.lt.s32.totalorder %s21, 1
      %s470 = scalar_select %p469, %s21, 1
      %s471 = smul.addr %s470, 8
      %s472 = scalar_lea.vmem %s5, %s471
      %p473 = scmp.lt.s32.totalorder %s21, 1
      %s474 = scalar_select %p473, %s21, 1
      %s475 = smul.addr %s474, 8
      %s476 = scalar_lea.vmem %s6, %s475
      %p477 = scmp.lt.s32.totalorder %s21, 1
      %s478 = scalar_select %p477, %s21, 1
      %s479 = smul.addr %s478, 8
      %s480 = scalar_lea.vmem %s7, %s479
      %p481 = scmp.lt.s32.totalorder %s21, 1
      %s482 = scalar_select %p481, %s21, 1
      %s483 = scalar_lea.vmem %s10, %s482
      %v484 = vld [vmem:[%s449] sm:$0xff]
      %v485 = vld [vmem:[%s449 + $0x8] sm:$0xff]
      %v486 = vld [vmem:[%s449 + $0x10] sm:$0xf]
      %v487 = vmul.f32 %v484, 0.8007374
      %v488 = vmul.f32 %v485, 0.8007374
      %v489 = vmul.f32 %v486, 0.8007374
      %v490 = vmul.f32 %v484, 0.94595945
      %v491 = vmul.f32 %v485, 0.94595945
      %v492 = vmul.f32 %v486, 0.94595945
      %496 = vrot.lane.b32.xlu0 %v490, 127
      %v497 = vpop.permute.xlu0 %496
      %498 = vrot.lane.b32.xlu0 %v491, 127
      %v499 = vpop.permute.xlu0 %498
      %500 = vrot.lane.b32.xlu0 %v492, 127
      %v501 = vpop.permute.xlu0 %500
      %v505 = vadd.f32 %v487, %v497
      %v506 = vadd.f32 %v488, %v499
      %v507 = vadd.f32 %v489, %v501
      %511 = vrot.lane.b32.xlu0 %v484, 126
      %v512 = vpop.permute.xlu0 %511
      %513 = vrot.lane.b32.xlu0 %v485, 126
      %v514 = vpop.permute.xlu0 %513
      %515 = vrot.lane.b32.xlu0 %v486, 126
      %v516 = vpop.permute.xlu0 %515
      %v520 = vadd.f32 %v505, %v512
      %v521 = vadd.f32 %v506, %v514
      %v522 = vadd.f32 %v507, %v516
      %523 = vrot.lane.b32.xlu0 %v490, 125
      %v524 = vpop.permute.xlu0 %523
      %525 = vrot.lane.b32.xlu0 %v491, 125
      %v526 = vpop.permute.xlu0 %525
      %527 = vrot.lane.b32.xlu0 %v492, 125
      %v528 = vpop.permute.xlu0 %527
      %v532 = vadd.f32 %v520, %v524
      %v533 = vadd.f32 %v521, %v526
      %v534 = vadd.f32 %v522, %v528
      %538 = vrot.lane.b32.xlu0 %v487, 124
      %v539 = vpop.permute.xlu0 %538
      %540 = vrot.lane.b32.xlu0 %v488, 124
      %v541 = vpop.permute.xlu0 %540
      %542 = vrot.lane.b32.xlu0 %v489, 124
      %v543 = vpop.permute.xlu0 %542
      %v547 = vadd.f32 %v532, %v539
      %v548 = vadd.f32 %v533, %v541
      %v549 = vadd.f32 %v534, %v543
      %v550 = vmul.f32 %v547, 0.8007374
      %v551 = vmul.f32 %v548, 0.8007374
      %v552 = vmul.f32 %v547, 0.94595945
      %v553 = vmul.f32 %v548, 0.94595945
      %v554 = vmul.f32 %v549, 0.94595945
      %vm558 = vcmask 1046528
      %v559 = vrot.slane %v552, 1
      %v560 = vrot.slane %v553, 1
      %v561 = vsel %vm558, %v559, %v560
      %v562 = vrot.slane %v554, 1
      %v563 = vsel %vm558, %v560, %v562
      %v566 = vadd.f32 %v550, %v561
      %v567 = vadd.f32 %v551, %v563
      %vm571 = vcmask 1045504
      %v572 = vrot.slane %v547, 2
      %v573 = vrot.slane %v548, 2
      %v574 = vsel %vm571, %v572, %v573
      %v575 = vrot.slane %v549, 2
      %v576 = vsel %vm571, %v573, %v575
      %v579 = vadd.f32 %v566, %v574
      %v580 = vadd.f32 %v567, %v576
      %vm581 = vcmask 1044480
      %v582 = vrot.slane %v552, 3
      %v583 = vrot.slane %v553, 3
      %v584 = vsel %vm581, %v582, %v583
      %v585 = vrot.slane %v554, 3
      %v586 = vsel %vm581, %v583, %v585
      %v589 = vadd.f32 %v579, %v584
      %v590 = vadd.f32 %v580, %v586
      %v591 = vmul.f32 %v549, 0.8007374
      %vm595 = vcmask 1043456
      %v596 = vrot.slane %v550, 4
      %v597 = vrot.slane %v551, 4
      %v598 = vsel %vm595, %v596, %v597
      %v599 = vrot.slane %v591, 4
      %v600 = vsel %vm595, %v597, %v599
      %v603 = vadd.f32 %v589, %v598
      %v604 = vadd.f32 %v590, %v600
      %v605 = vld [vmem:[%s454] sm:$0xff]
      %v606 = vld [vmem:[%s454 + $0x8] sm:$0xff]
      %v607 = vsub.f32 0.0, %v605
      %v608 = vsub.f32 0.0, %v606
      %v609 = vmax.f32 %v607, 0.0
      %v610 = vmax.f32 %v608, 0.0
      %v611 = vand.u32 2147483647, %v605
      %v612 = vand.u32 2147483647, %v606
      %v613 = vsub.f32 0.0, %v611
      %v614 = vsub.f32 0.0, %v612
      %v615 = vmul.f32 %v613, 1.442695
      %v616 = vpow.pop %v615
      %v617 = vmul.f32 %v614, 1.442695
      %v618 = vpow.pop %v617
      %v619 = vadd.f32 %v616, 1.0
      %v620 = vadd.f32 %v618, 1.0
      %v621 = vlog2.pop %v619
      %v622 = vmul.f32 %v621, 0.6931472
      %v623 = vlog2.pop %v620
      %v624 = vmul.f32 %v623, 0.6931472
      %v625 = vadd.f32 %v609, %v622
      %v626 = vadd.f32 %v610, %v624
      %v627 = vsub.f32 0.0, %v625
      %v628 = vsub.f32 0.0, %v626
      %v629 = vmax.f32 %v627, -9.2103405
      %v630 = vmax.f32 %v628, -9.2103405
      %v631 = vmin.f32 %v629, -0.000100005
      %v632 = vmin.f32 %v630, -0.000100005
      %v633 = vsub.f32 %v607, %v625
      %v634 = vsub.f32 %v608, %v626
      %v635 = vmax.f32 %v633, -9.2103405
      %v636 = vmax.f32 %v634, -9.2103405
      %v637 = vmin.f32 %v635, -0.000100005
      %v638 = vmin.f32 %v636, -0.000100005
      %v639 = vmul.f32 %v627, 1.442695
      %v640 = vpow.pop %v639
      %v641 = vmul.f32 %v628, 1.442695
      %v642 = vpow.pop %v641
      %v643 = vmax.f32 %v640, 0.0001
      %v644 = vmax.f32 %v642, 0.0001
      %v645 = vmin.f32 %v643, 0.9999
      %v646 = vmin.f32 %v644, 0.9999
      %vm647 = vcmp.eq.f32.partialorder %v603, 1.0
      %vm648 = vcmp.eq.f32.partialorder %v604, 1.0
      %v649 = vsel %vm647, 1, 0
      %v650 = vsel %vm648, 1, 0
      %v651 = vcvt.s32.f32 %v649
      %v652 = vcvt.s32.f32 %v650
      %vm653 = vcmp.lt.f32.partialorder %v603, 1.0
      %vm654 = vcmp.lt.f32.partialorder %v604, 1.0
      %v655 = vsel %vm653, 1, 0
      %v656 = vsel %vm654, 1, 0
      %v657 = vcvt.s32.f32 %v655
      %v658 = vcvt.s32.f32 %v656
      %v659 = vsub.f32 1.0, %v603
      %v660 = vsub.f32 1.0, %v604
      %v661 = vmul.f32 %v659, %v659
      %v662 = vmul.f32 %v660, %v660
      %v663 = vmul.f32 %v661, %v661
      %v664 = vmul.f32 %v662, %v662
      %v665 = vsub.f32 1.0, %v645
      %v666 = vsub.f32 1.0, %v646
      %v667 = vmul.f32 %v665, %v665
      %v668 = vmul.f32 %v666, %v666
      %v669 = vmul.f32 %v667, %v631
      %v670 = vmul.f32 %v668, %v632
      %v671 = vmul.f32 %v669, %v651
      %v672 = vmul.f32 %v670, %v652
      %vm673 = vcmask 130048
      %v674 = vsel %vm673, %v671, 0.0
      %v675 = vsel %vm673, %v672, 0.0
      %v676 = vadd.f32 %v674, %v675
      %677 = vadd.xlane.f32.xlu0 %v676
      %v678 = vpop.xlane.xlu0 %677
      %v679 = vrot.slane %v678, 4
      %v680 = vadd.f32 %v678, %v679
      %v681 = vrot.slane %v680, 2
      %v682 = vadd.f32 %v680, %v681
      %v683 = vrot.slane %v682, 1
      %v684 = vadd.f32 %v682, %v683
      %s685 = vtos %v684
      %v686 = vmul.f32 %v645, %v645
      %v687 = vmul.f32 %v646, %v646
      %v688 = vmul.f32 %v663, %v686
      %v689 = vmul.f32 %v664, %v687
      %v690 = vmul.f32 %v688, %v637
      %v691 = vmul.f32 %v689, %v638
      %v692 = vmul.f32 %v690, %v657
      %v693 = vmul.f32 %v691, %v658
      %v694 = vsel %vm673, %v692, 0.0
      %v695 = vsel %vm673, %v693, 0.0
      %v696 = vadd.f32 %v694, %v695
      %697 = vadd.xlane.f32.xlu0 %v696
      %v698 = vpop.xlane.xlu0 %697
      %v699 = vrot.slane %v698, 4
      %v700 = vadd.f32 %v698, %v699
      %v701 = vrot.slane %v700, 2
      %v702 = vadd.f32 %v700, %v701
      %v703 = vrot.slane %v702, 1
      %v704 = vadd.f32 %v702, %v703
      %s705 = vtos %v704
      %v706 = vsel %vm673, %v651, 0.0
      %v707 = vsel %vm673, %v652, 0.0
      %v708 = vadd.f32 %v706, %v707
      %709 = vadd.xlane.f32.xlu0 %v708
      %v710 = vpop.xlane.xlu0 %709
      %v711 = vrot.slane %v710, 4
      %v712 = vadd.f32 %v710, %v711
      %v713 = vrot.slane %v712, 2
      %v714 = vadd.f32 %v712, %v713
      %v715 = vrot.slane %v714, 1
      %v716 = vadd.f32 %v714, %v715
      %s717 = vtos %v716
      %v718 = vld [vmem:[%s459] sm:$0xff]
      %v719 = vld [vmem:[%s464] sm:$0xff]
      %v720 = vsub.f32 %v718, %v719
      %v721 = vand.u32 2147483647, %v720
      %v722 = vld [vmem:[%s468] sm:$0x3]
      %v724 = vlaneseq
      %v725 = vshrl.u32 %v724, 7
      %v726 = vsub.s32 0, %v725
      %v727 = vrot.slane %v722, %v726
      %v728 = vlaneseq
      %v729 = vshrl.u32 %v728, 7
      %v730 = vsub.s32 1, %v729
      %v731 = vrot.slane %v722, %v730
      %v732 = vcombine.low %v727, %v731
      %v734 = vmul.f32 %v721, %v732
      %v736 = vcombine.high %v734, %v734
      %vm738 = vcmask 1041408
      %v739 = vsel %vm738, %v734, 0.0
      %v740 = vsel %vm738, %v736, 0.0
      %v741 = vadd.f32 %v739, %v740
      %742 = vadd.xlane.f32.xlu0 %v741
      %v743 = vpop.xlane.xlu0 %742
      %v744 = vrot.slane %v743, 4
      %v745 = vadd.f32 %v743, %v744
      %v746 = vrot.slane %v745, 2
      %v747 = vadd.f32 %v745, %v746
      %v748 = vrot.slane %v747, 1
      %v749 = vadd.f32 %v747, %v748
      %s750 = vtos %v749
      %v751 = vrot.slane %v734, 2
      %v752 = vrot.slane %v736, 2
      %v755 = vsel %vm738, %v751, 0.0
      %v756 = vsel %vm738, %v752, 0.0
      %v757 = vadd.f32 %v755, %v756
      %758 = vadd.xlane.f32.xlu0 %v757
      %v759 = vpop.xlane.xlu0 %758
      %v760 = vrot.slane %v759, 4
      %v761 = vadd.f32 %v759, %v760
      %v762 = vrot.slane %v761, 2
      %v763 = vadd.f32 %v761, %v762
      %v764 = vrot.slane %v763, 1
      %v765 = vadd.f32 %v763, %v764
      %s766 = vtos %v765
      %v767 = vld [vmem:[%s472] sm:$0xff]
      %v768 = vld [vmem:[%s8] sm:$0xff]
      %v769 = vld [vmem:[%s8 + $0x8] sm:$0xff]
      %v770 = vld [vmem:[%s8 + $0x10] sm:$0xff]
      %v771 = vld [vmem:[%s8 + $0x18] sm:$0xff]
      %v772 = vld [vmem:[%s8 + $0x20] sm:$0xff]
      %v773 = vld [vmem:[%s8 + $0x28] sm:$0xff]
      %v774 = vld [vmem:[%s8 + $0x30] sm:$0xff]
      %v775 = vld [vmem:[%s8 + $0x38] sm:$0xff]
      %v776 = vld [vmem:[%s8 + $0x40] sm:$0xff]
      %v777 = vld [vmem:[%s8 + $0x48] sm:$0xff]
      %v778 = vld [vmem:[%s8 + $0x50] sm:$0xff]
      %v779 = vld [vmem:[%s8 + $0x58] sm:$0xff]
      %v780 = vld [vmem:[%s8 + $0x60] sm:$0xff]
      %v781 = vld [vmem:[%s8 + $0x68] sm:$0xff]
      %v782 = vld [vmem:[%s8 + $0x70] sm:$0xff]
      %v783 = vld [vmem:[%s8 + $0x78] sm:$0xff]
      %v784 = vld [vmem:[%s9] sm:$0x1]
      %v786 = vlaneseq
      %v787 = vshrl.u32 %v786, 7
      %v788 = vsub.s32 0, %v787
      %v789 = vrot.slane %v784, %v788
      %791 = vmatprep.subr.mxu0 0.0
      %792 = vmatpush1.msra.mxu0 %v768
      %793 = vmatprep.subr.mxu0 0.0
      %794 = vmatpush1.msra.mxu0 %v769
      %795 = vmatprep.subr.mxu0 0.0
      %796 = vmatpush1.msra.mxu0 %v770
      %797 = vmatprep.subr.mxu0 0.0
      %798 = vmatpush1.msra.mxu0 %v771
      %799 = vmatprep.subr.mxu0 0.0
      %800 = vmatpush1.msra.mxu0 %v772
      %801 = vmatprep.subr.mxu0 0.0
      %802 = vmatpush1.msra.mxu0 %v773
      %803 = vmatprep.subr.mxu0 0.0
      %804 = vmatpush1.msra.mxu0 %v774
      %805 = vmatprep.subr.mxu0 0.0
      %806 = vmatpush1.msra.mxu0 %v775
      %807 = vmatprep.subr.mxu0 0.0
      %808 = vmatpush1.msra.mxu0 %v776
      %809 = vmatprep.subr.mxu0 0.0
      %810 = vmatpush1.msra.mxu0 %v777
      %811 = vmatprep.subr.mxu0 0.0
      %812 = vmatpush1.msra.mxu0 %v778
      %813 = vmatprep.subr.mxu0 0.0
      %814 = vmatpush1.msra.mxu0 %v779
      %815 = vmatprep.subr.mxu0 0.0
      %816 = vmatpush1.msra.mxu0 %v780
      %817 = vmatprep.subr.mxu0 0.0
      %818 = vmatpush1.msra.mxu0 %v781
      %819 = vmatprep.subr.mxu0 0.0
      %820 = vmatpush1.msra.mxu0 %v782
      %821 = vmatprep.subr.mxu0 0.0
      %822 = vmatpush1.msra.mxu0 %v783
      %823 = vmatprep.subr.mxu0 0.0
      %824 = vmatpush1.msra.mxu0 0.0
      %825 = vmatprep.subr.mxu0 0.0
      %826 = vmatpush1.msra.mxu0 0.0
      %827 = vmatprep.subr.mxu0 0.0
      %828 = vmatpush1.msra.mxu0 0.0
      %829 = vmatprep.subr.mxu0 0.0
      %830 = vmatpush1.msra.mxu0 0.0
      %831 = vmatprep.subr.mxu0 0.0
      %832 = vmatpush1.msra.mxu0 0.0
      %833 = vmatprep.subr.mxu0 0.0
      %834 = vmatpush1.msra.mxu0 0.0
      %835 = vmatprep.subr.mxu0 0.0
      %836 = vmatpush1.msra.mxu0 0.0
      %837 = vmatprep.subr.mxu0 0.0
      %838 = vmatpush1.msra.mxu0 0.0
      %839 = vmatprep.subr.mxu0 0.0
      %840 = vmatpush1.msra.mxu0 0.0
      %841 = vmatprep.subr.mxu0 0.0
      %842 = vmatpush1.msra.mxu0 0.0
      %843 = vmatprep.subr.mxu0 0.0
      %844 = vmatpush1.msra.mxu0 0.0
      %845 = vmatprep.subr.mxu0 0.0
      %846 = vmatpush1.msra.mxu0 0.0
      %847 = vmatprep.subr.mxu0 0.0
      %848 = vmatpush1.msra.mxu0 0.0
      %849 = vmatprep.subr.mxu0 0.0
      %850 = vmatpush1.msra.mxu0 0.0
      %851 = vmatprep.subr.mxu0 0.0
      %852 = vmatpush1.msra.mxu0 0.0
      %853 = vmatprep.subr.mxu0 0.0
      %854 = vmatpush1.msra.mxu0 0.0
      %855 = vmatprep.mubr.f32.mxu0 0.0
      %856 = vmatmul.mubr.f32.gmra.mrb[0].mxu0 %v767
      %v857 = vpop.f32.mrb[0].mxu0
      %v858 = vadd.f32 %v789, %v857
      %v859 = vpop.f32.mrb[0].mxu0
      %860 = vdwg.mxu0
      %vm861 = vcmask 80896
      %v862 = vsel %vm861, %v858, -inf
      %863 = vmax.xlane.f32.xlu0 %v862
      %v864 = vpop.xlane.xlu0 %863
      %v865 = vsub.f32 %v858, %v864
      %v866 = vmul.f32 %v865, 1.442695
      %v867 = vpow.pop %v866
      %v868 = vsel %vm861, %v867, 0.0
      %869 = vadd.xlane.f32.xlu0 %v868
      %v870 = vpop.xlane.xlu0 %869
      %v871 = vlog2.pop %v870
      %v872 = vmul.f32 %v871, 0.6931472
      %v873 = vadd.f32 %v864, %v872
      %v874 = vlaneseq
      %v875 = vand.u32 %v874, 127
      %v876 = vld [vmem:[%s476] sm:$0xff]
      %877 = vset.pattern.permute.xlu0 0
      %878 = vperm.xlu0 %877, %v876
      %v879 = vpop.permute.xlu0 %878
      %vm880 = vcmp.eq.s32.totalorder %v875, %v879
      %v881 = vsel %vm880, 1, 0
      %v882 = vcvt.s32.f32 %v881
      %v883 = vmul.f32 %v858, %v882
      %v884 = vsel %vm861, %v883, 0.0
      %885 = vadd.xlane.f32.xlu0 %v884
      %v886 = vpop.xlane.xlu0 %885
      %v887 = vsub.f32 %v873, %v886
      %v888 = vld [vmem:[%s480] sm:$0xff]
      %v889 = vmul.f32 %v887, %v888
      %vm890 = vcmask 7168
      %v891 = vsel %vm890, %v889, 0.0
      %892 = vadd.xlane.f32.xlu0 %v891
      %v893 = vpop.xlane.xlu0 %892
      %v894 = vrot.slane %v893, 4
      %v895 = vadd.f32 %v893, %v894
      %v896 = vrot.slane %v895, 2
      %v897 = vadd.f32 %v895, %v896
      %v898 = vrot.slane %v897, 1
      %v899 = vadd.f32 %v897, %v898
      %s900 = vtos %v899
      %vm901 = vcmp.eq.s32.totalorder %v875, 0
      %v902 = vstv %s685
      %v903 = vsel %vm901, %v902, 0.0
      %vm904 = vcmp.eq.s32.totalorder %v875, 1
      %v905 = vstv %s705
      %v906 = vsel %vm904, %v905, %v903
      %vm907 = vcmp.eq.s32.totalorder %v875, 2
      %v908 = vstv %s717
      %v909 = vsel %vm907, %v908, %v906
      %vm910 = vcmp.eq.s32.totalorder %v875, 3
      %v911 = vstv %s750
      %v912 = vsel %vm910, %v911, %v909
      %vm913 = vcmp.eq.s32.totalorder %v875, 4
      %v914 = vstv %s766
      %v915 = vsel %vm913, %v914, %v912
      %vm916 = vcmp.eq.s32.totalorder %v875, 5
      %v917 = vstv %s900
      %v918 = vsel %vm916, %v917, %v915
      %919 = vst [vmem:[%s483] sm:$0x1] %v918
      %p920 = scmp.lt.s32.totalorder %s21, 1
      %s921 = scalar_select %p920, %s21, 1
      %s922 = scalar_lea.vmem %s10, %s921
      // Predicated region
      $region61: #{loss_fn.1} parent=59 // pred_check
        %p923 = pneg %p289
      $region62: #{loss_fn.1} parent=59 // pred_check_branch
        %925 = sbr.rel (%p923) target = $region64
      $region63: #{loss_fn.1} parent=59 // pred_region
        _
      $region64: #{loss_fn.1} parent=59 // pred_fallthru
        _
    $region60: #{loss_fn.1} parent=5 // pred_fallthru
      _
    %p926 = scmp.le.s32.totalorder 2, %s16
    // Predicated region
    $region65: #{loss_fn.1} parent=5 // pred_check
      %p927 = pneg %p926
    $region66: #{loss_fn.1} parent=5 // pred_check_branch
      %929 = sbr.rel (%p927) target = $region68
    $region67: #{loss_fn.1} parent=5 // pred_region
      %s930 = ssub.s32 %s16, 2
      // Predicated region
      $region69: #{loss_fn.1} parent=67 // pred_check
        %p931 = pneg %p295
      $region70: #{loss_fn.1} parent=67 // pred_check_branch
        %933 = sbr.rel (%p931) target = $region72
      $region71: #{loss_fn.1} parent=67 // pred_region
        %p934 = scmp.lt.s32.totalorder %s22, 1
        %s935 = scalar_select %p934, %s22, 1
        %s936 = scalar_lea.vmem %s10, %s935
      $region72: #{loss_fn.1} parent=67 // pred_fallthru
        _
    $region68: #{loss_fn.1} parent=5 // pred_fallthru
      _
  $region6: #{loss_fn.1} parent=0 // loop_footer
    %s20 = sadd.s32 1, %s16
  $region7: #{loss_fn.1} parent=0 // loop_footer_branch
    %15 = sbr.rel target = $region3
  $region8: #{loss_fn.1} parent=0 // loop_exit
    _

</llo_original>
